<compile_context>
chip_gen: v5e
topology: v5e:2x2
jax: 0.10.0
libtpu: 0.0.40
codegen_flags: <defaults>
</compile_context>

<pallas_src>
import jax
import jax.numpy as jnp
from jax.experimental import pallas as pl
from jax.experimental.pallas import tpu as pltpu

_LANE = 512                    # lane-dense last dim for the divisible path
_TILE_ROWS = 1024              # (1024, 512) f32 tile = 2 MiB per pipeline buffer
_SINGLE_BLOCK_BYTES = 3 << 20  # run as a single block when data/array fits this
_RAGGED_CHUNK = 64 * 1024      # (1, 64Ki) f32 tile = 256 KiB data per buffer


def _scale_kernel(w_ref, x_ref, o_ref):
    # w_ref: (1, 1) f32 scalar in SMEM; x_ref / o_ref: lane-dense 2-D VMEM tiles.
    # y = x * W[0, 0]  -- pure vld / vmul / vst on the VPU; cast happens in-kernel.
    o_ref[...] = (x_ref[...].astype(jnp.float32) * w_ref[0, 0]).astype(o_ref.dtype)


def _choose_blocks(units, max_block_units, align):
    """Split `units` along one axis into `grid` blocks of `block` units each.

    `block` is rounded up to a multiple of `align` (TPU (8,128) tiling rule);
    the ragged last block is masked by Pallas.  When tiling is needed, the
    block count is forced even so the "parallel" grid axis load-balances
    across v7x's two TensorCores.
    """
    if units <= max_block_units:
        return units, 1
    nblk = -(-units // max_block_units)          # ceil-div
    if nblk % 2 == 1:
        nblk += 1                                # even count for the 2 TCs
    block = -(-units // nblk)
    block = -(-block // align) * align           # tiling alignment
    grid = -(-units // block)
    return block, grid


@jax.jit
def linear_forward(x: jax.Array, w: jax.Array) -> jax.Array:
    """nn.Linear(1, 1, bias=False):  x: (B, 1), w: (1, 1) -> (B, 1)."""
    B, F_in = x.shape
    F_out, K = w.shape
    assert F_in == 1 and F_out == 1 and K == 1, "LinearModel is nn.Linear(1, 1, bias=False)"

    n = B * F_in
    x_flat = jnp.reshape(x, (n,))            # contiguous reshape: free (bitcast)
    w_s = w.astype(jnp.float32)              # (1, 1) scalar destined for SMEM
    out_dtype = jnp.result_type(x.dtype, w.dtype)

    if n % _LANE == 0:
        # Lane-dense (rows, 512) view: free reshape, unmasked 512-wide stores.
        rows = n // _LANE
        x2d = jnp.reshape(x_flat, (rows, _LANE))
        if rows * _LANE * x2d.dtype.itemsize <= _SINGLE_BLOCK_BYTES:
            block_rows, grid = rows, 1       # single VMEM-resident block
        else:
            block_rows, grid = _choose_blocks(rows, _TILE_ROWS, 8)
        block = (block_rows, _LANE)
        index_map = lambda i: (i, 0)
    else:
        # General n: (1, n) view, tiled along lanes; the ragged tail block is
        # masked by Pallas, so no padding pass and no post-trim pass.
        x2d = jnp.reshape(x_flat, (1, n))
        if n <= _RAGGED_CHUNK:
            block_cols, grid = n, 1          # single (full-array) block
        else:
            block_cols, grid = _choose_blocks(n, _RAGGED_CHUNK, 128)
        block = (1, block_cols)
        index_map = lambda i: (0, i)

    y2d = pl.pallas_call(
        _scale_kernel,
        out_shape=jax.ShapeDtypeStruct(x2d.shape, out_dtype),
        grid=(grid,),
        in_specs=[
            # Whole (1, 1) weight as a scalar in SMEM (no VMEM tile / DMA stream).
            pl.BlockSpec(memory_space=pltpu.MemorySpace.SMEM),
            # Lane-dense input tile, double-buffered over the grid by Pallas.
            pl.BlockSpec(block, index_map),
        ],
        out_specs=pl.BlockSpec(block, index_map),
        compiler_params=pltpu.CompilerParams(
            # Independent blocks -> shard across v7x's 2 TensorCores.
            dimension_semantics=("parallel",),
        ),
    )(w_s, x2d)

    return jnp.reshape(y2d, (B, F_out))      # contiguous reshape: free


if __name__ == "__main__":
    key = jax.random.PRNGKey(0)
    kx, kw, kx2, kx3 = jax.random.split(key, 4)

    w = jax.random.uniform(kw, (1, 1), dtype=jnp.float32, minval=-1.0, maxval=1.0)

    # Small batch consistent with nn.Linear(1, 1, bias=False): B = 8
    # (ragged path, single full-array block).
    B = 8
    x = jax.random.normal(kx, (B, 1), dtype=jnp.float32)
    y = linear_forward(x, w)
    jax.block_until_ready(y)
    assert y.shape == (B, 1)
    assert jnp.allclose(y, x @ w.T, atol=1e-6), "mismatch vs reference (small batch)"

    # Ragged large batch: (1, n) view, ~10 lane-tiled blocks with a masked tail.
    B2 = 600_000
    x2 = jax.random.normal(kx2, (B2, 1), dtype=jnp.float32)
    y2 = linear_forward(x2, w)
    jax.block_until_ready(y2)
    assert y2.shape == (B2, 1)
    assert jnp.allclose(y2, x2 @ w.T, atol=1e-6), "mismatch vs reference (ragged tiled)"

    # 512-divisible large batch: lane-dense (2048, 512) view, 2 x (1024, 512) blocks.
    B3 = 1 << 20
    x3 = jax.random.normal(kx3, (B3, 1), dtype=jnp.float32)
    y3 = linear_forward(x3, w)
    jax.block_until_ready(y3)
    assert y3.shape == (B3, 1)
    assert jnp.allclose(y3, x3 @ w.T, atol=1e-6), "mismatch vs reference (dense tiled)"

    print("KERNEL_OK")
</pallas_src>

<mosaic_0001>
module attributes {stable_mosaic.version = 11 : i64} {
  func.func @_scale_kernel(%arg0: i32, %arg1: memref<1x1xf32, #tpu.memory_space<smem>>, %arg2: memref<1x8xf32, #tpu.memory_space<vmem>>, %arg3: memref<1x8xf32, #tpu.memory_space<vmem>>) attributes {dimension_semantics = [#tpu.dimension_semantics<parallel>], iteration_bounds = array<i64: 1>, scalar_prefetch = 0 : i64, scratch_operands = 0 : i64, tpu.core_type = #tpu.core_type<tc>, window_params = [{transform_indices = @transform_0, window_bounds = array<i64: 1, 1>}, {transform_indices = @transform_1, window_bounds = array<i64: 1, 8>}, {transform_indices = @transform_2, window_bounds = array<i64: 1, 8>}]} {
    %c0 = arith.constant 0 : index
    %c0_0 = arith.constant 0 : index
    %0 = vector.load %arg2[%c0, %c0_0] : memref<1x8xf32, #tpu.memory_space<vmem>>, vector<1x8xf32>
    %c0_1 = arith.constant 0 : index
    %c0_2 = arith.constant 0 : index
    %1 = memref.load %arg1[%c0_1, %c0_2] : memref<1x1xf32, #tpu.memory_space<smem>>
    %2 = vector.broadcast %1 : f32 to vector<1x8xf32>
    %3 = arith.mulf %0, %2 : vector<1x8xf32>
    %c0_3 = arith.constant 0 : index
    %c0_4 = arith.constant 0 : index
    %4 = vector.load %arg3[%c0_3, %c0_4] : memref<1x8xf32, #tpu.memory_space<vmem>>, vector<1x8xf32>
    tpu.vector_store %arg3[%c0_3, %c0_4], %3 {strides = array<i32>} : memref<1x8xf32, #tpu.memory_space<vmem>>, vector<1x8xf32>,
    return
  }
  func.func @transform_0(%arg0: i32) -> (i32, i32) {
    %c0_i32 = arith.constant 0 : i32
    %c0_i32_0 = arith.constant 0 : i32
    %c0_i32_1 = arith.constant 0 : i32
    return %c0_i32, %c0_i32_0 : i32, i32
  }
  func.func @transform_1(%arg0: i32) -> (i32, i32) {
    %c0_i32 = arith.constant 0 : i32
    %c0_i32_0 = arith.constant 0 : i32
    return %c0_i32, %arg0 : i32, i32
  }
  func.func @transform_2(%arg0: i32) -> (i32, i32) {
    %c0_i32 = arith.constant 0 : i32
    %c0_i32_0 = arith.constant 0 : i32
    return %c0_i32, %arg0 : i32, i32
  }
}

</mosaic_0001>

<llo_original>
// kernel: linear_forward.1
$region0: #{linear_forward.1}
  #allocation0 [shape = 'u32[]', space=smem, size = 0x4, offset = 0x4, fixed_abs, tag = 'smem constant byte address 0x4 - core index']
  #allocation1 [shape = 'u32[72,128]{1,0:T(1,128)}', space=vmem, size = 0x9000, scoped, tag = 'internal scratch']
  #allocation2 [shape = 'f32[1,1]{1,0:T(1,128)S(6)}', space=smem, size = 0x200, scoped, tag = 'scoped memory for linear_forward.1']
  %s0 = inlined_call_operand.<no memory space> [shape: f32[1,1], index: 0, kind: input, shape index: {}]
  %s1 = inlined_call_operand.vmem [shape: f32[1,8], index: 1, kind: input, shape index: {}]
  %s2 = inlined_call_operand.hbm [shape: f32[1,8], index: 2, kind: output, shape index: {}]
  %s3 = sld [smem:[#allocation0]]
  $region18: #{linear_forward.1} parent=0
    _
  %s5 = ssub.s32 1, %s3
  %s6 = scalar_select 0, %s5, %s3
  %7 = sst [smem:[#allocation2]] %s0
  $region1: #{linear_forward.1} parent=0
    #allocation3 [shape = 'u8[512]{0}', space=vmem, size = 0x400, scoped, tag = 'output window, operand 0, single buffered']
    #allocation4 [shape = 's32[1]{0}', space=sflag, size = 0x4, scoped, tag = 'scoped memory for linear_forward.1']
    %8 = vsyncpa [#allocation4], 0
    // Predicated region
    $region2: #{linear_forward.1} parent=1 // pred_check
      _
    $region3: #{linear_forward.1} parent=1 // pred_check_branch
      %10 = sbr.rel (0) target = $region5
    $region4: #{linear_forward.1} parent=1 // pred_region
      _
    $region5: #{linear_forward.1} parent=1 // pred_fallthru
      _
    // Predicated region
    $region6: #{linear_forward.1} parent=1 // pred_check
      _
    $region7: #{linear_forward.1} parent=1 // pred_check_branch
      %12 = sbr.rel (0) target = $region9
    $region8: #{linear_forward.1} parent=1 // pred_region
      _
    $region9: #{linear_forward.1} parent=1 // pred_fallthru
      _
    %v13 = vld [vmem:[%s1] sm:$0x1]
    %s14 = sld [smem:[#allocation2]]
    %v15 = vstv %s14
    %v16 = vmul.f32 %v13, %v15
    %vm17 = vcmask 57344
    %18 = vst.msk [vmem:[#allocation3] sm:$0x1] %vm17, %v16
    // Predicated region
    $region10: #{linear_forward.1} parent=1 // pred_check
      _
    $region11: #{linear_forward.1} parent=1 // pred_check_branch
      %20 = sbr.rel (0) target = $region13
    $region12: #{linear_forward.1} parent=1 // pred_region
      %22 = vsyncadd [#allocation4], 0
      %s24 = sshll.u32 [#allocation3], 4
      %s25 = int_to_ptr.vmem [resolvable:$true] %s24
      %s26 = sshll.u32 %s2, 4
      %s27 = int_to_ptr.hbm [resolvable:$true] %s26
      %29 = dma.vmem_to_hbm [thread:$0]  %s25, 16, %s27, [#allocation4]
    $region13: #{linear_forward.1} parent=1 // pred_fallthru
      _
    // Predicated region
    $region14: #{linear_forward.1} parent=1 // pred_check
      _
    $region15: #{linear_forward.1} parent=1 // pred_check_branch
      %31 = sbr.rel (0) target = $region17
    $region16: #{linear_forward.1} parent=1 // pred_region
      %33 = dma.done [#allocation4], 16
    $region17: #{linear_forward.1} parent=1 // pred_fallthru
      _
    %34 = vsyncpa [#allocation4], 1

</llo_original>
